<compile_context>
chip_gen: v7x
topology: tpu7x:2x2x1
jax: 0.10.0
libtpu: 0.0.40
codegen_flags: <defaults>
</compile_context>

<pallas_src>
import functools

import jax
import jax.numpy as jnp
from jax.experimental import pallas as pl
from jax.experimental.pallas import tpu as pltpu

LANE = 128


def _round_up(x, m):
    return ((x + m - 1) // m) * m


def _decoder_kernel(z_ref,
                    w1_ref, b1_ref,
                    w2_ref, b2_ref,
                    w3_ref, b3_ref,
                    w4_ref, b4_ref,
                    w5_ref, b5_ref,
                    lb_ref, scale_ref,
                    out_ref):
    bf16 = jnp.bfloat16
    # Layer 1: latent -> 32 (padded to 128 lanes); bias-add + ReLU in f32.
    h = jnp.dot(z_ref[...].astype(bf16), w1_ref[...],
                preferred_element_type=jnp.float32) + b1_ref[...]
    h = jnp.maximum(h, 0.0)
    # Layer 2: 32 -> 64 (padded 128 -> 128).
    h = jnp.dot(h.astype(bf16), w2_ref[...],
                preferred_element_type=jnp.float32) + b2_ref[...]
    h = jnp.maximum(h, 0.0)
    # Layer 3: 64 -> 128.  (Dropout(0.2) is identity in eval mode.)
    h = jnp.dot(h.astype(bf16), w3_ref[...],
                preferred_element_type=jnp.float32) + b3_ref[...]
    h = jnp.maximum(h, 0.0)
    # Layer 4: 128 -> 256.
    h = jnp.dot(h.astype(bf16), w4_ref[...],
                preferred_element_type=jnp.float32) + b4_ref[...]
    h = jnp.maximum(h, 0.0)
    # Layer 5: 256 -> output_dim (unpadded), f32 epilogue.
    x = jnp.dot(h.astype(bf16), w5_ref[...],
                preferred_element_type=jnp.float32) + b5_ref[...]
    # Bounded output: lb + (ub - lb) * sigmoid(x); scale = ub - lb precomputed.
    out_ref[...] = lb_ref[...] + scale_ref[...] * jax.nn.sigmoid(x)


def pack_decoder(params, lb, ub, compute_dtype=jnp.bfloat16):
    """One-time packing of weights/biases/bounds (hoisted out of per-call path).

    Hidden output dims are zero-padded to lane multiples (128): padded weight
    rows/cols and bias lanes are exact zeros, so padded lanes stay zero through
    ReLU and never contribute. The latent input dim and the final output dim
    are left unpadded (they meet the BlockSpec rule as full-array dims)."""
    out_dim = params[-1][0].shape[1]
    outs = [W.shape[1] for (W, _) in params]
    pouts = [_round_up(d, LANE) for d in outs[:-1]] + [out_dim]
    pins = [params[0][0].shape[0]] + pouts[:-1]

    packed = []
    for (W, b), pin, pout in zip(params, pins, pouts):
        din, dout = W.shape
        Wp = jnp.zeros((pin, pout), compute_dtype).at[:din, :dout].set(
            W.astype(compute_dtype))
        bp = jnp.zeros((1, pout), jnp.float32).at[:, :dout].set(
            jnp.reshape(b, (1, dout)).astype(jnp.float32))
        packed += [Wp, bp]

    lbp = jnp.reshape(lb, (1, out_dim)).astype(jnp.float32)
    scalep = jnp.reshape(ub - lb, (1, out_dim)).astype(jnp.float32)
    return tuple(packed) + (lbp, scalep)


@functools.partial(jax.jit, static_argnames=("tile_b",))
def decoder_forward(z, packed, tile_b=1024):
    """z: (B, latent_dim) f32 (unpadded). packed: output of pack_decoder.
    Returns (B, output_dim) f32."""
    B, latent_dim = z.shape
    out_dim = packed[-2].shape[1]

    # Batch tile: single sublane-aligned tile for small B; otherwise a multiple
    # of 256 chosen so the grid has >= 2 steps (feeds both v7x TensorCores).
    if B <= 256:
        tb = max(8, _round_up(B, 8))
    else:
        tb = min(tile_b, _round_up(-(-B // 2), 256))
    n_tiles = pl.cdiv(B, tb)

    vmem = pltpu.MemorySpace.VMEM
    const2 = lambda i: (0, 0)

    in_specs = [pl.BlockSpec((tb, latent_dim), lambda i: (i, 0), memory_space=vmem)]
    for arr in packed:  # weights, biases, lb, scale: full-array, VMEM-resident
        in_specs.append(pl.BlockSpec(arr.shape, const2, memory_space=vmem))
    out_spec = pl.BlockSpec((tb, out_dim), lambda i: (i, 0), memory_space=vmem)

    return pl.pallas_call(
        _decoder_kernel,
        out_shape=jax.ShapeDtypeStruct((B, out_dim), jnp.float32),
        grid=(n_tiles,),
        in_specs=in_specs,
        out_specs=out_spec,
        compiler_params=pltpu.CompilerParams(
            dimension_semantics=("parallel",),   # megacore sharding on v7x
            vmem_limit_bytes=32 << 20,           # working set is ~1 MiB
        ),
    )(z, *packed)


def init_params(key, latent_dim, output_dim):
    dims = [latent_dim, 32, 64, 128, 256, output_dim]
    params = []
    for i in range(len(dims) - 1):
        key, kw, kb = jax.random.split(key, 3)
        fan_in = dims[i]
        bound = 1.0 / jnp.sqrt(fan_in)
        W = jax.random.uniform(kw, (dims[i], dims[i + 1]), jnp.float32, -bound, bound)
        b = jax.random.uniform(kb, (1, dims[i + 1]), jnp.float32, -bound, bound)
        params.append((W, b))
    return params


def reference_forward(z, params, lb, ub):
    h = z
    for i, (W, b) in enumerate(params):
        h = h @ W + b
        if i < len(params) - 1:
            h = jnp.maximum(h, 0.0)
    return lb + (ub - lb) * jax.nn.sigmoid(h)


if __name__ == "__main__":
    latent_dim = 8
    output_dim = 10

    key = jax.random.PRNGKey(0)
    kz1, kz2, kp = jax.random.split(key, 3)
    params = init_params(kp, latent_dim, output_dim)

    # Deterministic output bounds (1-D, like the PyTorch buffers).
    lb = jnp.linspace(-2.0, -1.0, output_dim, dtype=jnp.float32)
    ub = jnp.linspace(1.0, 3.0, output_dim, dtype=jnp.float32)

    # Pack weights/bounds ONCE (hoisted out of the forward path).
    packed = pack_decoder(params, lb, ub)

    # Small batch: single grid step, z block (8, 8), out block (8, 10).
    B_small = 8
    z_small = jax.random.normal(kz1, (B_small, latent_dim), jnp.float32)
    out_small = jax.block_until_ready(decoder_forward(z_small, packed, tile_b=1024))
    ref_small = reference_forward(z_small, params, lb, ub)
    assert out_small.shape == (B_small, output_dim)
    assert jnp.allclose(out_small, ref_small, atol=2e-2, rtol=2e-2), "small-batch mismatch"

    # Larger batch, not a multiple of the tile: 2-step grid + ragged last tile.
    B_big = 1000
    z_big = jax.random.normal(kz2, (B_big, latent_dim), jnp.float32)
    out_big = jax.block_until_ready(decoder_forward(z_big, packed, tile_b=1024))
    ref_big = reference_forward(z_big, params, lb, ub)
    assert out_big.shape == (B_big, output_dim)
    assert jnp.allclose(out_big, ref_big, atol=2e-2, rtol=2e-2), "big-batch mismatch"

    print("KERNEL_OK")
</pallas_src>

<mosaic_0001>
module attributes {stable_mosaic.version = 11 : i64} {
  func.func @_decoder_kernel(%arg0: i32, %arg1: memref<8x8xf32, #tpu.memory_space<vmem>>, %arg2: memref<8x128xbf16, #tpu.memory_space<vmem>>, %arg3: memref<1x128xf32, #tpu.memory_space<vmem>>, %arg4: memref<128x128xbf16, #tpu.memory_space<vmem>>, %arg5: memref<1x128xf32, #tpu.memory_space<vmem>>, %arg6: memref<128x128xbf16, #tpu.memory_space<vmem>>, %arg7: memref<1x128xf32, #tpu.memory_space<vmem>>, %arg8: memref<128x256xbf16, #tpu.memory_space<vmem>>, %arg9: memref<1x256xf32, #tpu.memory_space<vmem>>, %arg10: memref<256x10xbf16, #tpu.memory_space<vmem>>, %arg11: memref<1x10xf32, #tpu.memory_space<vmem>>, %arg12: memref<1x10xf32, #tpu.memory_space<vmem>>, %arg13: memref<1x10xf32, #tpu.memory_space<vmem>>, %arg14: memref<8x10xf32, #tpu.memory_space<vmem>>) attributes {dimension_semantics = [#tpu.dimension_semantics<parallel>], iteration_bounds = array<i64: 1>, scalar_prefetch = 0 : i64, scratch_operands = 0 : i64, tpu.core_type = #tpu.core_type<tc>, window_params = [{transform_indices = @transform_0, window_bounds = array<i64: 8, 8>}, {pipeline_mode = #tpu.pipeline_mode<synchronous>, transform_indices = @transform_1, window_bounds = array<i64: 8, 128>}, {pipeline_mode = #tpu.pipeline_mode<synchronous>, transform_indices = @transform_2, window_bounds = array<i64: 1, 128>}, {pipeline_mode = #tpu.pipeline_mode<synchronous>, transform_indices = @transform_3, window_bounds = array<i64: 128, 128>}, {pipeline_mode = #tpu.pipeline_mode<synchronous>, transform_indices = @transform_4, window_bounds = array<i64: 1, 128>}, {pipeline_mode = #tpu.pipeline_mode<synchronous>, transform_indices = @transform_5, window_bounds = array<i64: 128, 128>}, {pipeline_mode = #tpu.pipeline_mode<synchronous>, transform_indices = @transform_6, window_bounds = array<i64: 1, 128>}, {pipeline_mode = #tpu.pipeline_mode<synchronous>, transform_indices = @transform_7, window_bounds = array<i64: 128, 256>}, {pipeline_mode = #tpu.pipeline_mode<synchronous>, transform_indices = @transform_8, window_bounds = array<i64: 1, 256>}, {pipeline_mode = #tpu.pipeline_mode<synchronous>, transform_indices = @transform_9, window_bounds = array<i64: 256, 10>}, {pipeline_mode = #tpu.pipeline_mode<synchronous>, transform_indices = @transform_10, window_bounds = array<i64: 1, 10>}, {pipeline_mode = #tpu.pipeline_mode<synchronous>, transform_indices = @transform_11, window_bounds = array<i64: 1, 10>}, {pipeline_mode = #tpu.pipeline_mode<synchronous>, transform_indices = @transform_12, window_bounds = array<i64: 1, 10>}, {transform_indices = @transform_13, window_bounds = array<i64: 8, 10>}]} {
    %c0 = arith.constant 0 : index
    %c0_0 = arith.constant 0 : index
    %0 = vector.load %arg1[%c0, %c0_0] : memref<8x8xf32, #tpu.memory_space<vmem>>, vector<8x8xf32>
    %1 = arith.truncf %0 : vector<8x8xf32> to vector<8x8xbf16>
    %c0_1 = arith.constant 0 : index
    %c0_2 = arith.constant 0 : index
    %2 = vector.load %arg2[%c0_1, %c0_2] : memref<8x128xbf16, #tpu.memory_space<vmem>>, vector<8x128xbf16>
    %cst = arith.constant dense<0.000000e+00> : vector<8x128xf32>
    %3 = tpu.matmul %1, %2, %cst {dimension_numbers = #tpu.dot_dimension_numbers<[1], [0], [0], [1], [0, 0, 1, 1], [], []>} : vector<8x8xbf16>, vector<8x128xbf16>, vector<8x128xf32> -> vector<8x128xf32>
    %c0_3 = arith.constant 0 : index
    %c0_4 = arith.constant 0 : index
    %4 = vector.load %arg3[%c0_3, %c0_4] : memref<1x128xf32, #tpu.memory_space<vmem>>, vector<1x128xf32>
    %5 = vector.broadcast %4 : vector<1x128xf32> to vector<8x128xf32>
    %6 = arith.addf %3, %5 : vector<8x128xf32>
    %cst_5 = arith.constant 0.000000e+00 : f32
    %7 = vector.broadcast %cst_5 : f32 to vector<8x128xf32>
    %8 = arith.maximumf %6, %7 : vector<8x128xf32>
    %9 = arith.truncf %8 : vector<8x128xf32> to vector<8x128xbf16>
    %c0_6 = arith.constant 0 : index
    %c0_7 = arith.constant 0 : index
    %10 = vector.load %arg4[%c0_6, %c0_7] : memref<128x128xbf16, #tpu.memory_space<vmem>>, vector<128x128xbf16>
    %cst_8 = arith.constant dense<0.000000e+00> : vector<8x128xf32>
    %11 = tpu.matmul %9, %10, %cst_8 {dimension_numbers = #tpu.dot_dimension_numbers<[1], [0], [0], [1], [0, 0, 1, 1], [], []>} : vector<8x128xbf16>, vector<128x128xbf16>, vector<8x128xf32> -> vector<8x128xf32>
    %c0_9 = arith.constant 0 : index
    %c0_10 = arith.constant 0 : index
    %12 = vector.load %arg5[%c0_9, %c0_10] : memref<1x128xf32, #tpu.memory_space<vmem>>, vector<1x128xf32>
    %13 = vector.broadcast %12 : vector<1x128xf32> to vector<8x128xf32>
    %14 = arith.addf %11, %13 : vector<8x128xf32>
    %cst_11 = arith.constant 0.000000e+00 : f32
    %15 = vector.broadcast %cst_11 : f32 to vector<8x128xf32>
    %16 = arith.maximumf %14, %15 : vector<8x128xf32>
    %17 = arith.truncf %16 : vector<8x128xf32> to vector<8x128xbf16>
    %c0_12 = arith.constant 0 : index
    %c0_13 = arith.constant 0 : index
    %18 = vector.load %arg6[%c0_12, %c0_13] : memref<128x128xbf16, #tpu.memory_space<vmem>>, vector<128x128xbf16>
    %cst_14 = arith.constant dense<0.000000e+00> : vector<8x128xf32>
    %19 = tpu.matmul %17, %18, %cst_14 {dimension_numbers = #tpu.dot_dimension_numbers<[1], [0], [0], [1], [0, 0, 1, 1], [], []>} : vector<8x128xbf16>, vector<128x128xbf16>, vector<8x128xf32> -> vector<8x128xf32>
    %c0_15 = arith.constant 0 : index
    %c0_16 = arith.constant 0 : index
    %20 = vector.load %arg7[%c0_15, %c0_16] : memref<1x128xf32, #tpu.memory_space<vmem>>, vector<1x128xf32>
    %21 = vector.broadcast %20 : vector<1x128xf32> to vector<8x128xf32>
    %22 = arith.addf %19, %21 : vector<8x128xf32>
    %cst_17 = arith.constant 0.000000e+00 : f32
    %23 = vector.broadcast %cst_17 : f32 to vector<8x128xf32>
    %24 = arith.maximumf %22, %23 : vector<8x128xf32>
    %25 = arith.truncf %24 : vector<8x128xf32> to vector<8x128xbf16>
    %c0_18 = arith.constant 0 : index
    %c0_19 = arith.constant 0 : index
    %26 = vector.load %arg8[%c0_18, %c0_19] : memref<128x256xbf16, #tpu.memory_space<vmem>>, vector<128x256xbf16>
    %cst_20 = arith.constant dense<0.000000e+00> : vector<8x256xf32>
    %27 = tpu.matmul %25, %26, %cst_20 {dimension_numbers = #tpu.dot_dimension_numbers<[1], [0], [0], [1], [0, 0, 1, 1], [], []>} : vector<8x128xbf16>, vector<128x256xbf16>, vector<8x256xf32> -> vector<8x256xf32>
    %c0_21 = arith.constant 0 : index
    %c0_22 = arith.constant 0 : index
    %28 = vector.load %arg9[%c0_21, %c0_22] : memref<1x256xf32, #tpu.memory_space<vmem>>, vector<1x256xf32>
    %29 = vector.broadcast %28 : vector<1x256xf32> to vector<8x256xf32>
    %30 = arith.addf %27, %29 : vector<8x256xf32>
    %cst_23 = arith.constant 0.000000e+00 : f32
    %31 = vector.broadcast %cst_23 : f32 to vector<8x256xf32>
    %32 = arith.maximumf %30, %31 : vector<8x256xf32>
    %33 = arith.truncf %32 : vector<8x256xf32> to vector<8x256xbf16>
    %c0_24 = arith.constant 0 : index
    %c0_25 = arith.constant 0 : index
    %34 = vector.load %arg10[%c0_24, %c0_25] : memref<256x10xbf16, #tpu.memory_space<vmem>>, vector<256x10xbf16>
    %cst_26 = arith.constant dense<0.000000e+00> : vector<8x10xf32>
    %35 = tpu.matmul %33, %34, %cst_26 {dimension_numbers = #tpu.dot_dimension_numbers<[1], [0], [0], [1], [0, 0, 1, 1], [], []>} : vector<8x256xbf16>, vector<256x10xbf16>, vector<8x10xf32> -> vector<8x10xf32>
    %c0_27 = arith.constant 0 : index
    %c0_28 = arith.constant 0 : index
    %36 = vector.load %arg11[%c0_27, %c0_28] : memref<1x10xf32, #tpu.memory_space<vmem>>, vector<1x10xf32>
    %37 = vector.broadcast %36 : vector<1x10xf32> to vector<8x10xf32>
    %38 = arith.addf %35, %37 : vector<8x10xf32>
    %c0_29 = arith.constant 0 : index
    %c0_30 = arith.constant 0 : index
    %39 = vector.load %arg12[%c0_29, %c0_30] : memref<1x10xf32, #tpu.memory_space<vmem>>, vector<1x10xf32>
    %c0_31 = arith.constant 0 : index
    %c0_32 = arith.constant 0 : index
    %40 = vector.load %arg13[%c0_31, %c0_32] : memref<1x10xf32, #tpu.memory_space<vmem>>, vector<1x10xf32>
    %41 = arith.negf %38 : vector<8x10xf32>
    %42 = math.exp %41 : vector<8x10xf32>
    %cst_33 = arith.constant 1.000000e+00 : f32
    %43 = vector.broadcast %cst_33 : f32 to vector<8x10xf32>
    %44 = arith.addf %43, %42 : vector<8x10xf32>
    %45 = arith.divf %43, %44 : vector<8x10xf32>
    %46 = vector.broadcast %40 : vector<1x10xf32> to vector<8x10xf32>
    %47 = arith.mulf %46, %45 : vector<8x10xf32>
    %48 = vector.broadcast %39 : vector<1x10xf32> to vector<8x10xf32>
    %49 = arith.addf %48, %47 : vector<8x10xf32>
    %c0_34 = arith.constant 0 : index
    %c0_35 = arith.constant 0 : index
    %50 = vector.load %arg14[%c0_34, %c0_35] : memref<8x10xf32, #tpu.memory_space<vmem>>, vector<8x10xf32>
    tpu.vector_store %arg14[%c0_34, %c0_35], %49 {strides = array<i32>} : memref<8x10xf32, #tpu.memory_space<vmem>>, vector<8x10xf32>,
    return
  }
  func.func @transform_0(%arg0: i32) -> (i32, i32) {
    %c0_i32 = arith.constant 0 : i32
    %c0_i32_0 = arith.constant 0 : i32
    return %arg0, %c0_i32 : i32, i32
  }
  func.func @transform_1(%arg0: i32) -> (i32, i32) {
    %c0_i32 = arith.constant 0 : i32
    %c0_i32_0 = arith.constant 0 : i32
    %c0_i32_1 = arith.constant 0 : i32
    return %c0_i32, %c0_i32_0 : i32, i32
  }
  func.func @transform_2(%arg0: i32) -> (i32, i32) {
    %c0_i32 = arith.constant 0 : i32
    %c0_i32_0 = arith.constant 0 : i32
    %c0_i32_1 = arith.constant 0 : i32
    return %c0_i32, %c0_i32_0 : i32, i32
  }
  func.func @transform_3(%arg0: i32) -> (i32, i32) {
    %c0_i32 = arith.constant 0 : i32
    %c0_i32_0 = arith.constant 0 : i32
    %c0_i32_1 = arith.constant 0 : i32
    return %c0_i32, %c0_i32_0 : i32, i32
  }
  func.func @transform_4(%arg0: i32) -> (i32, i32) {
    %c0_i32 = arith.constant 0 : i32
    %c0_i32_0 = arith.constant 0 : i32
    %c0_i32_1 = arith.constant 0 : i32
    return %c0_i32, %c0_i32_0 : i32, i32
  }
  func.func @transform_5(%arg0: i32) -> (i32, i32) {
    %c0_i32 = arith.constant 0 : i32
    %c0_i32_0 = arith.constant 0 : i32
    %c0_i32_1 = arith.constant 0 : i32
    return %c0_i32, %c0_i32_0 : i32, i32
  }
  func.func @transform_6(%arg0: i32) -> (i32, i32) {
    %c0_i32 = arith.constant 0 : i32
    %c0_i32_0 = arith.constant 0 : i32
    %c0_i32_1 = arith.constant 0 : i32
    return %c0_i32, %c0_i32_0 : i32, i32
  }
  func.func @transform_7(%arg0: i32) -> (i32, i32) {
    %c0_i32 = arith.constant 0 : i32
    %c0_i32_0 = arith.constant 0 : i32
    %c0_i32_1 = arith.constant 0 : i32
    return %c0_i32, %c0_i32_0 : i32, i32
  }
  func.func @transform_8(%arg0: i32) -> (i32, i32) {
    %c0_i32 = arith.constant 0 : i32
    %c0_i32_0 = arith.constant 0 : i32
    %c0_i32_1 = arith.constant 0 : i32
    return %c0_i32, %c0_i32_0 : i32, i32
  }
  func.func @transform_9(%arg0: i32) -> (i32, i32) {
    %c0_i32 = arith.constant 0 : i32
    %c0_i32_0 = arith.constant 0 : i32
    %c0_i32_1 = arith.constant 0 : i32
    return %c0_i32, %c0_i32_0 : i32, i32
  }
  func.func @transform_10(%arg0: i32) -> (i32, i32) {
    %c0_i32 = arith.constant 0 : i32
    %c0_i32_0 = arith.constant 0 : i32
    %c0_i32_1 = arith.constant 0 : i32
    return %c0_i32, %c0_i32_0 : i32, i32
  }
  func.func @transform_11(%arg0: i32) -> (i32, i32) {
    %c0_i32 = arith.constant 0 : i32
    %c0_i32_0 = arith.constant 0 : i32
    %c0_i32_1 = arith.constant 0 : i32
    return %c0_i32, %c0_i32_0 : i32, i32
  }
  func.func @transform_12(%arg0: i32) -> (i32, i32) {
    %c0_i32 = arith.constant 0 : i32
    %c0_i32_0 = arith.constant 0 : i32
    %c0_i32_1 = arith.constant 0 : i32
    return %c0_i32, %c0_i32_0 : i32, i32
  }
  func.func @transform_13(%arg0: i32) -> (i32, i32) {
    %c0_i32 = arith.constant 0 : i32
    %c0_i32_0 = arith.constant 0 : i32
    return %arg0, %c0_i32 : i32, i32
  }
}

</mosaic_0001>

<llo_original>
// kernel: decoder_forward.1
$region0: #{decoder_forward.1}
  #allocation0 [shape = 'u32[]', space=smem, size = 0x4, offset = 0x4, fixed_abs, tag = 'smem constant byte address 0x4 - core index']
  #allocation1 [shape = 'u32[144,128]{1,0:T(1,128)}', space=vmem, size = 0x12000, scoped, tag = 'internal scratch']
  %s0 = inlined_call_operand.vmem [shape: f32[8,8], index: 0, kind: input, shape index: {}]
  %s1 = inlined_call_operand.vmem [shape: bf16[8,128], index: 1, kind: input, shape index: {}]
  %s2 = inlined_call_operand.vmem [shape: f32[1,128], index: 2, kind: input, shape index: {}]
  %s3 = inlined_call_operand.hbm [shape: bf16[128,128], index: 3, kind: input, shape index: {}]
  %s4 = inlined_call_operand.vmem [shape: f32[1,128], index: 4, kind: input, shape index: {}]
  %s5 = inlined_call_operand.hbm [shape: bf16[128,128], index: 5, kind: input, shape index: {}]
  %s6 = inlined_call_operand.vmem [shape: f32[1,128], index: 6, kind: input, shape index: {}]
  %s7 = inlined_call_operand.vmem [shape: bf16[128,256], index: 7, kind: input, shape index: {}]
  %s8 = inlined_call_operand.vmem [shape: f32[1,256], index: 8, kind: input, shape index: {}]
  %s9 = inlined_call_operand.vmem [shape: bf16[256,10], index: 9, kind: input, shape index: {}]
  %s10 = inlined_call_operand.vmem [shape: f32[1,10], index: 10, kind: input, shape index: {}]
  %s11 = inlined_call_operand.vmem [shape: f32[1,10], index: 11, kind: input, shape index: {}]
  %s12 = inlined_call_operand.vmem [shape: f32[1,10], index: 12, kind: input, shape index: {}]
  %s13 = inlined_call_operand.hbm [shape: f32[8,10], index: 13, kind: output, shape index: {}]
  %s14 = sld [smem:[#allocation0]]
  $region70: #{decoder_forward.1} parent=0
    _
  %s16 = ssub.s32 1, %s14
  %s17 = scalar_select 0, %s16, %s14
  $region1: #{decoder_forward.1} parent=0
    #allocation2 [shape = 'u8[32768]{0}', space=vmem, size = 0x8000, scoped, tag = 'input window, operand 3, single buffered']
    #allocation3 [shape = 's32[1]{0}', space=sflag, size = 0x4, scoped, tag = 'scoped memory for decoder_forward.1']
    #allocation4 [shape = 's32[1]{0}', space=sflag, size = 0x4, scoped, tag = 'scoped memory for decoder_forward.1']
    #allocation5 [shape = 'u8[32768]{0}', space=vmem, size = 0x8000, scoped, tag = 'input window, operand 5, single buffered']
    #allocation6 [shape = 's32[1]{0}', space=sflag, size = 0x4, scoped, tag = 'scoped memory for decoder_forward.1']
    #allocation7 [shape = 'u8[4096]{0}', space=vmem, size = 0x1000, scoped, tag = 'output window, operand 0, single buffered']
    %18 = vsyncpa [#allocation3], 0
    %19 = vsyncpa [#allocation6], 0
    %20 = vsyncpa [#allocation4], 0
    // Predicated region
    $region2: #{decoder_forward.1} parent=1 // pred_check
      _
    $region3: #{decoder_forward.1} parent=1 // pred_check_branch
      %22 = sbr.rel (0) target = $region5
    $region4: #{decoder_forward.1} parent=1 // pred_region
      _
    $region5: #{decoder_forward.1} parent=1 // pred_fallthru
      _
    // Predicated region
    $region6: #{decoder_forward.1} parent=1 // pred_check
      _
    $region7: #{decoder_forward.1} parent=1 // pred_check_branch
      %24 = sbr.rel (0) target = $region9
    $region8: #{decoder_forward.1} parent=1 // pred_region
      _
    $region9: #{decoder_forward.1} parent=1 // pred_fallthru
      _
    // Predicated region
    $region10: #{decoder_forward.1} parent=1 // pred_check
      _
    $region11: #{decoder_forward.1} parent=1 // pred_check_branch
      %26 = sbr.rel (0) target = $region13
    $region12: #{decoder_forward.1} parent=1 // pred_region
      _
    $region13: #{decoder_forward.1} parent=1 // pred_fallthru
      _
    // Predicated region
    $region14: #{decoder_forward.1} parent=1 // pred_check
      _
    $region15: #{decoder_forward.1} parent=1 // pred_check_branch
      %28 = sbr.rel (0) target = $region17
    $region16: #{decoder_forward.1} parent=1 // pred_region
      %s30 = ssub.s32 1024, 1024
      %31 = vsyncadd [#allocation3], %s30
      %s32 = sshll.u32 [#allocation2], 4
      %s33 = int_to_ptr.vmem [resolvable:$true] %s32
      %38 = dma.hbm_to_vmem [thread:$0]  %s3, 1024, %s33, [#allocation3], 64, 64, 4
    $region17: #{decoder_forward.1} parent=1 // pred_fallthru
      _
    // Predicated region
    $region18: #{decoder_forward.1} parent=1 // pred_check
      _
    $region19: #{decoder_forward.1} parent=1 // pred_check_branch
      %40 = sbr.rel (0) target = $region21
    $region20: #{decoder_forward.1} parent=1 // pred_region
      _
    $region21: #{decoder_forward.1} parent=1 // pred_fallthru
      _
    // Predicated region
    $region22: #{decoder_forward.1} parent=1 // pred_check
      _
    $region23: #{decoder_forward.1} parent=1 // pred_check_branch
      %42 = sbr.rel (0) target = $region25
    $region24: #{decoder_forward.1} parent=1 // pred_region
      %s44 = ssub.s32 1024, 1024
      %45 = vsyncadd [#allocation6], %s44
      %s46 = sshll.u32 [#allocation5], 4
      %s47 = int_to_ptr.vmem [resolvable:$true] %s46
      %52 = dma.hbm_to_vmem [thread:$0]  %s5, 1024, %s47, [#allocation6], 64, 64, 4
    $region25: #{decoder_forward.1} parent=1 // pred_fallthru
      _
    // Predicated region
    $region26: #{decoder_forward.1} parent=1 // pred_check
      _
    $region27: #{decoder_forward.1} parent=1 // pred_check_branch
      %54 = sbr.rel (0) target = $region29
    $region28: #{decoder_forward.1} parent=1 // pred_region
      _
    $region29: #{decoder_forward.1} parent=1 // pred_fallthru
      _
    // Predicated region
    $region30: #{decoder_forward.1} parent=1 // pred_check
      _
    $region31: #{decoder_forward.1} parent=1 // pred_check_branch
      %56 = sbr.rel (0) target = $region33
    $region32: #{decoder_forward.1} parent=1 // pred_region
      _
    $region33: #{decoder_forward.1} parent=1 // pred_fallthru
      _
    // Predicated region
    $region34: #{decoder_forward.1} parent=1 // pred_check
      _
    $region35: #{decoder_forward.1} parent=1 // pred_check_branch
      %58 = sbr.rel (0) target = $region37
    $region36: #{decoder_forward.1} parent=1 // pred_region
      _
    $region37: #{decoder_forward.1} parent=1 // pred_fallthru
      _
    // Predicated region
    $region38: #{decoder_forward.1} parent=1 // pred_check
      _
    $region39: #{decoder_forward.1} parent=1 // pred_check_branch
      %60 = sbr.rel (0) target = $region41
    $region40: #{decoder_forward.1} parent=1 // pred_region
      _
    $region41: #{decoder_forward.1} parent=1 // pred_fallthru
      _
    // Predicated region
    $region42: #{decoder_forward.1} parent=1 // pred_check
      _
    $region43: #{decoder_forward.1} parent=1 // pred_check_branch
      %62 = sbr.rel (0) target = $region45
    $region44: #{decoder_forward.1} parent=1 // pred_region
      _
    $region45: #{decoder_forward.1} parent=1 // pred_fallthru
      _
    // Predicated region
    $region46: #{decoder_forward.1} parent=1 // pred_check
      _
    $region47: #{decoder_forward.1} parent=1 // pred_check_branch
      %64 = sbr.rel (0) target = $region49
    $region48: #{decoder_forward.1} parent=1 // pred_region
      _
    $region49: #{decoder_forward.1} parent=1 // pred_fallthru
      _
    // Predicated region
    $region50: #{decoder_forward.1} parent=1 // pred_check
      _
    $region51: #{decoder_forward.1} parent=1 // pred_check_branch
      %66 = sbr.rel (0) target = $region53
    $region52: #{decoder_forward.1} parent=1 // pred_region
      _
    $region53: #{decoder_forward.1} parent=1 // pred_fallthru
      _
    // Predicated region
    $region54: #{decoder_forward.1} parent=1 // pred_check
      _
    $region55: #{decoder_forward.1} parent=1 // pred_check_branch
      %68 = sbr.rel (0) target = $region57
    $region56: #{decoder_forward.1} parent=1 // pred_region
      %69 = dma.done [#allocation3], 1024
    $region57: #{decoder_forward.1} parent=1 // pred_fallthru
      _
    // Predicated region
    $region58: #{decoder_forward.1} parent=1 // pred_check
      _
    $region59: #{decoder_forward.1} parent=1 // pred_check_branch
      %71 = sbr.rel (0) target = $region61
    $region60: #{decoder_forward.1} parent=1 // pred_region
      %72 = dma.done [#allocation6], 1024
    $region61: #{decoder_forward.1} parent=1 // pred_fallthru
      _
    %v74 = vld [vmem:[%s0] sm:$0xff]
    %v75 = vpack.c.bf16 %v74, %v74
    %v76 = vld [vmem:[%s1] sm:$0xf]
    %v77 = vld [vmem:[%s2] sm:$0x1]
    %v79 = vlaneseq
    %v80 = vshrl.u32 %v79, 7
    %v81 = vsub.s32 0, %v80
    %v82 = vrot.slane %v77, %v81
    %vm84 = vcmask 64512
    %v86 = vsel %vm84, %v75, 0
    %vm88 = vcmask 1043456
    %v90 = vsel %vm88, %v76, 0
    %92 = vmatprep.subr.bf16.mxu0 0
    %93 = vmatpush1.bf16.msra.mxu0 %v90
    %94 = vmatprep.subr.bf16.mxu0 0
    %95 = vmatpush1.bf16.msra.mxu0 0
    %96 = vmatprep.subr.bf16.mxu0 0
    %97 = vmatpush1.bf16.msra.mxu0 0
    %98 = vmatprep.subr.bf16.mxu0 0
    %99 = vmatpush1.bf16.msra.mxu0 0
    %100 = vmatprep.subr.bf16.mxu0 0
    %101 = vmatpush1.bf16.msra.mxu0 0
    %102 = vmatprep.subr.bf16.mxu0 0
    %103 = vmatpush1.bf16.msra.mxu0 0
    %104 = vmatprep.subr.bf16.mxu0 0
    %105 = vmatpush1.bf16.msra.mxu0 0
    %106 = vmatprep.subr.bf16.mxu0 0
    %107 = vmatpush1.bf16.msra.mxu0 0
    %108 = vmatprep.subr.bf16.mxu0 0
    %109 = vmatpush1.bf16.msra.mxu0 0
    %110 = vmatprep.subr.bf16.mxu0 0
    %111 = vmatpush1.bf16.msra.mxu0 0
    %112 = vmatprep.subr.bf16.mxu0 0
    %113 = vmatpush1.bf16.msra.mxu0 0
    %114 = vmatprep.subr.bf16.mxu0 0
    %115 = vmatpush1.bf16.msra.mxu0 0
    %116 = vmatprep.subr.bf16.mxu0 0
    %117 = vmatpush1.bf16.msra.mxu0 0
    %118 = vmatprep.subr.bf16.mxu0 0
    %119 = vmatpush1.bf16.msra.mxu0 0
    %120 = vmatprep.subr.bf16.mxu0 0
    %121 = vmatpush1.bf16.msra.mxu0 0
    %122 = vmatprep.subr.bf16.mxu0 0
    %123 = vmatpush1.bf16.msra.mxu0 0
    %124 = vmatprep.mubr.bf16.mxu0 0
    %125 = vmatmul.mubr.bf16.gmra.mrb[0].mxu0 %v86
    %v126 = vpop.f32.mrb[0].mxu0
    %v127 = vadd.f32 %v82, %v126
    %v128 = vpop.f32.mrb[0].mxu0
    %v129 = vpop.f32.mrb[0].mxu0
    %v130 = vpop.f32.mrb[0].mxu0
    %131 = vdwg.mxu0
    %v132 = vmax.f32 %v127, 0.0
    %v133 = vpack.c.bf16 %v132, %v132
    %v134 = vld [vmem:[#allocation2] sm:$0xf]
    %v135 = vld [vmem:[#allocation2 + $0x4] sm:$0xf]
    %v136 = vld [vmem:[#allocation2 + $0x8] sm:$0xf]
    %v137 = vld [vmem:[#allocation2 + $0xc] sm:$0xf]
    %v138 = vld [vmem:[#allocation2 + $0x10] sm:$0xf]
    %v139 = vld [vmem:[#allocation2 + $0x14] sm:$0xf]
    %v140 = vld [vmem:[#allocation2 + $0x18] sm:$0xf]
    %v141 = vld [vmem:[#allocation2 + $0x1c] sm:$0xf]
    %v142 = vld [vmem:[#allocation2 + $0x20] sm:$0xf]
    %v143 = vld [vmem:[#allocation2 + $0x24] sm:$0xf]
    %v144 = vld [vmem:[#allocation2 + $0x28] sm:$0xf]
    %v145 = vld [vmem:[#allocation2 + $0x2c] sm:$0xf]
    %v146 = vld [vmem:[#allocation2 + $0x30] sm:$0xf]
    %v147 = vld [vmem:[#allocation2 + $0x34] sm:$0xf]
    %v148 = vld [vmem:[#allocation2 + $0x38] sm:$0xf]
    %v149 = vld [vmem:[#allocation2 + $0x3c] sm:$0xf]
    %v150 = vld [vmem:[%s4] sm:$0x1]
    %v152 = vlaneseq
    %v153 = vshrl.u32 %v152, 7
    %v154 = vsub.s32 0, %v153
    %v155 = vrot.slane %v150, %v154
    %v173 = vunpack.c.l.b16 %v134
    %v174 = vunpack.c.l.b16 %v135
    %v175 = vunpack.c.l.b16 %v136
    %v176 = vunpack.c.l.b16 %v137
    %v177 = vunpack.c.l.b16 %v138
    %v178 = vunpack.c.l.b16 %v139
    %v179 = vunpack.c.l.b16 %v140
    %v180 = vunpack.c.l.b16 %v141
    %v181 = vunpack.c.l.b16 %v142
    %v182 = vunpack.c.l.b16 %v143
    %v183 = vunpack.c.l.b16 %v144
    %v184 = vunpack.c.l.b16 %v145
    %v185 = vunpack.c.l.b16 %v146
    %v186 = vunpack.c.l.b16 %v147
    %v187 = vunpack.c.l.b16 %v148
    %v188 = vunpack.c.l.b16 %v149
    %v189 = vpack.c.b16 %v174, %v173
    %v190 = vpack.c.b16 %v176, %v175
    %v191 = vpack.c.b16 %v178, %v177
    %v192 = vpack.c.b16 %v180, %v179
    %v193 = vpack.c.b16 %v182, %v181
    %v194 = vpack.c.b16 %v184, %v183
    %v195 = vpack.c.b16 %v186, %v185
    %v196 = vpack.c.b16 %v188, %v187
    %205 = vmatprep.subr.bf16.mxu0 0
    %206 = vmatpush1.bf16.msra.mxu0 %v189
    %207 = vmatprep.subr.bf16.mxu0 0
    %208 = vmatpush1.bf16.msra.mxu0 %v190
    %209 = vmatprep.subr.bf16.mxu0 0
    %210 = vmatpush1.bf16.msra.mxu0 %v191
    %211 = vmatprep.subr.bf16.mxu0 0
    %212 = vmatpush1.bf16.msra.mxu0 %v192
    %213 = vmatprep.subr.bf16.mxu0 0
    %214 = vmatpush1.bf16.msra.mxu0 %v193
    %215 = vmatprep.subr.bf16.mxu0 0
    %216 = vmatpush1.bf16.msra.mxu0 %v194
    %217 = vmatprep.subr.bf16.mxu0 0
    %218 = vmatpush1.bf16.msra.mxu0 %v195
    %219 = vmatprep.subr.bf16.mxu0 0
    %220 = vmatpush1.bf16.msra.mxu0 %v196
    %221 = vmatprep.subr.bf16.mxu0 0
    %222 = vmatpush1.bf16.msra.mxu0 0
    %223 = vmatprep.subr.bf16.mxu0 0
    %224 = vmatpush1.bf16.msra.mxu0 0
    %225 = vmatprep.subr.bf16.mxu0 0
    %226 = vmatpush1.bf16.msra.mxu0 0
    %227 = vmatprep.subr.bf16.mxu0 0
    %228 = vmatpush1.bf16.msra.mxu0 0
    %229 = vmatprep.subr.bf16.mxu0 0
    %230 = vmatpush1.bf16.msra.mxu0 0
    %231 = vmatprep.subr.bf16.mxu0 0
    %232 = vmatpush1.bf16.msra.mxu0 0
    %233 = vmatprep.subr.bf16.mxu0 0
    %234 = vmatpush1.bf16.msra.mxu0 0
    %235 = vmatprep.subr.bf16.mxu0 0
    %236 = vmatpush1.bf16.msra.mxu0 0
    %237 = vmatprep.mubr.bf16.mxu0 0
    %238 = vmatmul.mubr.bf16.gmra.mrb[0].mxu0 %v133
    %v239 = vpop.f32.mrb[0].mxu0
    %v240 = vadd.f32 %v155, %v239
    %v241 = vpop.f32.mrb[0].mxu0
    %v242 = vpop.f32.mrb[0].mxu0
    %v243 = vpop.f32.mrb[0].mxu0
    %244 = vdwg.mxu0
    %v245 = vmax.f32 %v240, 0.0
    %v246 = vpack.c.bf16 %v245, %v245
    %v247 = vld [vmem:[#allocation5] sm:$0xf]
    %v248 = vld [vmem:[#allocation5 + $0x4] sm:$0xf]
    %v249 = vld [vmem:[#allocation5 + $0x8] sm:$0xf]
    %v250 = vld [vmem:[#allocation5 + $0xc] sm:$0xf]
    %v251 = vld [vmem:[#allocation5 + $0x10] sm:$0xf]
    %v252 = vld [vmem:[#allocation5 + $0x14] sm:$0xf]
    %v253 = vld [vmem:[#allocation5 + $0x18] sm:$0xf]
    %v254 = vld [vmem:[#allocation5 + $0x1c] sm:$0xf]
    %v255 = vld [vmem:[#allocation5 + $0x20] sm:$0xf]
    %v256 = vld [vmem:[#allocation5 + $0x24] sm:$0xf]
    %v257 = vld [vmem:[#allocation5 + $0x28] sm:$0xf]
    %v258 = vld [vmem:[#allocation5 + $0x2c] sm:$0xf]
    %v259 = vld [vmem:[#allocation5 + $0x30] sm:$0xf]
    %v260 = vld [vmem:[#allocation5 + $0x34] sm:$0xf]
    %v261 = vld [vmem:[#allocation5 + $0x38] sm:$0xf]
    %v262 = vld [vmem:[#allocation5 + $0x3c] sm:$0xf]
    %v263 = vld [vmem:[%s6] sm:$0x1]
    %v265 = vlaneseq
    %v266 = vshrl.u32 %v265, 7
    %v267 = vsub.s32 0, %v266
    %v268 = vrot.slane %v263, %v267
    %v286 = vunpack.c.l.b16 %v247
    %v287 = vunpack.c.l.b16 %v248
    %v288 = vunpack.c.l.b16 %v249
    %v289 = vunpack.c.l.b16 %v250
    %v290 = vunpack.c.l.b16 %v251
    %v291 = vunpack.c.l.b16 %v252
    %v292 = vunpack.c.l.b16 %v253
    %v293 = vunpack.c.l.b16 %v254
    %v294 = vunpack.c.l.b16 %v255
    %v295 = vunpack.c.l.b16 %v256
    %v296 = vunpack.c.l.b16 %v257
    %v297 = vunpack.c.l.b16 %v258
    %v298 = vunpack.c.l.b16 %v259
    %v299 = vunpack.c.l.b16 %v260
    %v300 = vunpack.c.l.b16 %v261
    %v301 = vunpack.c.l.b16 %v262
    %v302 = vpack.c.b16 %v287, %v286
    %v303 = vpack.c.b16 %v289, %v288
    %v304 = vpack.c.b16 %v291, %v290
    %v305 = vpack.c.b16 %v293, %v292
    %v306 = vpack.c.b16 %v295, %v294
    %v307 = vpack.c.b16 %v297, %v296
    %v308 = vpack.c.b16 %v299, %v298
    %v309 = vpack.c.b16 %v301, %v300
    %318 = vmatprep.subr.bf16.mxu0 0
    %319 = vmatpush1.bf16.msra.mxu0 %v302
    %320 = vmatprep.subr.bf16.mxu0 0
    %321 = vmatpush1.bf16.msra.mxu0 %v303
    %322 = vmatprep.subr.bf16.mxu0 0
    %323 = vmatpush1.bf16.msra.mxu0 %v304
    %324 = vmatprep.subr.bf16.mxu0 0
    %325 = vmatpush1.bf16.msra.mxu0 %v305
    %326 = vmatprep.subr.bf16.mxu0 0
    %327 = vmatpush1.bf16.msra.mxu0 %v306
    %328 = vmatprep.subr.bf16.mxu0 0
    %329 = vmatpush1.bf16.msra.mxu0 %v307
    %330 = vmatprep.subr.bf16.mxu0 0
    %331 = vmatpush1.bf16.msra.mxu0 %v308
    %332 = vmatprep.subr.bf16.mxu0 0
    %333 = vmatpush1.bf16.msra.mxu0 %v309
    %334 = vmatprep.subr.bf16.mxu0 0
    %335 = vmatpush1.bf16.msra.mxu0 0
    %336 = vmatprep.subr.bf16.mxu0 0
    %337 = vmatpush1.bf16.msra.mxu0 0
    %338 = vmatprep.subr.bf16.mxu0 0
    %339 = vmatpush1.bf16.msra.mxu0 0
    %340 = vmatprep.subr.bf16.mxu0 0
    %341 = vmatpush1.bf16.msra.mxu0 0
    %342 = vmatprep.subr.bf16.mxu0 0
    %343 = vmatpush1.bf16.msra.mxu0 0
    %344 = vmatprep.subr.bf16.mxu0 0
    %345 = vmatpush1.bf16.msra.mxu0 0
    %346 = vmatprep.subr.bf16.mxu0 0
    %347 = vmatpush1.bf16.msra.mxu0 0
    %348 = vmatprep.subr.bf16.mxu0 0
    %349 = vmatpush1.bf16.msra.mxu0 0
    %350 = vmatprep.mubr.bf16.mxu0 0
    %351 = vmatmul.mubr.bf16.gmra.mrb[0].mxu0 %v246
    %v352 = vpop.f32.mrb[0].mxu0
    %v353 = vadd.f32 %v268, %v352
    %v354 = vpop.f32.mrb[0].mxu0
    %v355 = vpop.f32.mrb[0].mxu0
    %v356 = vpop.f32.mrb[0].mxu0
    %357 = vdwg.mxu0
    %v358 = vmax.f32 %v353, 0.0
    %v359 = vpack.c.bf16 %v358, %v358
    %v360 = vld [vmem:[%s7] sm:$0xff]
    %v361 = vld [vmem:[%s7 + $0x8] sm:$0xff]
    %v362 = vld [vmem:[%s7 + $0x10] sm:$0xff]
    %v363 = vld [vmem:[%s7 + $0x18] sm:$0xff]
    %v364 = vld [vmem:[%s7 + $0x20] sm:$0xff]
    %v365 = vld [vmem:[%s7 + $0x28] sm:$0xff]
    %v366 = vld [vmem:[%s7 + $0x30] sm:$0xff]
    %v367 = vld [vmem:[%s7 + $0x38] sm:$0xff]
    %v368 = vld [vmem:[%s7 + $0x40] sm:$0xff]
    %v369 = vld [vmem:[%s7 + $0x48] sm:$0xff]
    %v370 = vld [vmem:[%s7 + $0x50] sm:$0xff]
    %v371 = vld [vmem:[%s7 + $0x58] sm:$0xff]
    %v372 = vld [vmem:[%s7 + $0x60] sm:$0xff]
    %v373 = vld [vmem:[%s7 + $0x68] sm:$0xff]
    %v374 = vld [vmem:[%s7 + $0x70] sm:$0xff]
    %v375 = vld [vmem:[%s7 + $0x78] sm:$0xff]
    %v376 = vld [vmem:[%s8] sm:$0x3]
    %v378 = vlaneseq
    %v379 = vshrl.u32 %v378, 7
    %v380 = vsub.s32 0, %v379
    %v381 = vrot.slane %v376, %v380
    %v382 = vlaneseq
    %v383 = vshrl.u32 %v382, 7
    %v384 = vsub.s32 1, %v383
    %v385 = vrot.slane %v376, %v384
    %v404 = vunpack.c.l.b16 %v360
    %v405 = vunpack.c.h.b16 %v360
    %v406 = vunpack.c.l.b16 %v361
    %v407 = vunpack.c.h.b16 %v361
    %v408 = vunpack.c.l.b16 %v362
    %v409 = vunpack.c.h.b16 %v362
    %v410 = vunpack.c.l.b16 %v363
    %v411 = vunpack.c.h.b16 %v363
    %v412 = vunpack.c.l.b16 %v364
    %v413 = vunpack.c.h.b16 %v364
    %v414 = vunpack.c.l.b16 %v365
    %v415 = vunpack.c.h.b16 %v365
    %v416 = vunpack.c.l.b16 %v366
    %v417 = vunpack.c.h.b16 %v366
    %v418 = vunpack.c.l.b16 %v367
    %v419 = vunpack.c.h.b16 %v367
    %v420 = vunpack.c.l.b16 %v368
    %v421 = vunpack.c.h.b16 %v368
    %v422 = vunpack.c.l.b16 %v369
    %v423 = vunpack.c.h.b16 %v369
    %v424 = vunpack.c.l.b16 %v370
    %v425 = vunpack.c.h.b16 %v370
    %v426 = vunpack.c.l.b16 %v371
    %v427 = vunpack.c.h.b16 %v371
    %v428 = vunpack.c.l.b16 %v372
    %v429 = vunpack.c.h.b16 %v372
    %v430 = vunpack.c.l.b16 %v373
    %v431 = vunpack.c.h.b16 %v373
    %v432 = vunpack.c.l.b16 %v374
    %v433 = vunpack.c.h.b16 %v374
    %v434 = vunpack.c.l.b16 %v375
    %v435 = vunpack.c.h.b16 %v375
    %v436 = vpack.c.b16 %v406, %v404
    %v437 = vpack.c.b16 %v407, %v405
    %v438 = vpack.c.b16 %v410, %v408
    %v439 = vpack.c.b16 %v411, %v409
    %v440 = vpack.c.b16 %v414, %v412
    %v441 = vpack.c.b16 %v415, %v413
    %v442 = vpack.c.b16 %v418, %v416
    %v443 = vpack.c.b16 %v419, %v417
    %v444 = vpack.c.b16 %v422, %v420
    %v445 = vpack.c.b16 %v423, %v421
    %v446 = vpack.c.b16 %v426, %v424
    %v447 = vpack.c.b16 %v427, %v425
    %v448 = vpack.c.b16 %v430, %v428
    %v449 = vpack.c.b16 %v431, %v429
    %v450 = vpack.c.b16 %v434, %v432
    %v451 = vpack.c.b16 %v435, %v433
    %468 = vmatprep.subr.bf16.mxu0 %v437
    %469 = vmatpush1.bf16.msra.mxu0 %v436
    %470 = vmatprep.subr.bf16.mxu0 %v439
    %471 = vmatpush1.bf16.msra.mxu0 %v438
    %472 = vmatprep.subr.bf16.mxu0 %v441
    %473 = vmatpush1.bf16.msra.mxu0 %v440
    %474 = vmatprep.subr.bf16.mxu0 %v443
    %475 = vmatpush1.bf16.msra.mxu0 %v442
    %476 = vmatprep.subr.bf16.mxu0 %v445
    %477 = vmatpush1.bf16.msra.mxu0 %v444
    %478 = vmatprep.subr.bf16.mxu0 %v447
    %479 = vmatpush1.bf16.msra.mxu0 %v446
    %480 = vmatprep.subr.bf16.mxu0 %v449
    %481 = vmatpush1.bf16.msra.mxu0 %v448
    %482 = vmatprep.subr.bf16.mxu0 %v451
    %483 = vmatpush1.bf16.msra.mxu0 %v450
    %484 = vmatprep.subr.bf16.mxu0 0
    %485 = vmatpush1.bf16.msra.mxu0 0
    %486 = vmatprep.subr.bf16.mxu0 0
    %487 = vmatpush1.bf16.msra.mxu0 0
    %488 = vmatprep.subr.bf16.mxu0 0
    %489 = vmatpush1.bf16.msra.mxu0 0
    %490 = vmatprep.subr.bf16.mxu0 0
    %491 = vmatpush1.bf16.msra.mxu0 0
    %492 = vmatprep.subr.bf16.mxu0 0
    %493 = vmatpush1.bf16.msra.mxu0 0
    %494 = vmatprep.subr.bf16.mxu0 0
    %495 = vmatpush1.bf16.msra.mxu0 0
    %496 = vmatprep.subr.bf16.mxu0 0
    %497 = vmatpush1.bf16.msra.mxu0 0
    %498 = vmatprep.subr.bf16.mxu0 0
    %499 = vmatpush1.bf16.msra.mxu0 0
    %500 = vmatprep.mubr.bf16.mxu0 0
    %501 = vmatmul.mubr.bf16.gmra.mrb[0].mxu0 %v359
    %v502 = vpop.f32.mrb[0].mxu0
    %v503 = vadd.f32 %v381, %v502
    %v504 = vpop.f32.mrb[0].mxu0
    %v505 = vadd.f32 %v385, %v504
    %v506 = vpop.f32.mrb[0].mxu0
    %v507 = vpop.f32.mrb[0].mxu0
    %508 = vdwg.mxu0
    %v509 = vmax.f32 %v503, 0.0
    %v510 = vmax.f32 %v505, 0.0
    %v511 = vpack.c.bf16 %v509, %v509
    %v512 = vpack.c.bf16 %v510, %v510
    %v513 = vld [vmem:[%s9] sm:$0xf]
    %v514 = vld [vmem:[%s9 + $0x4] sm:$0xf]
    %v515 = vld [vmem:[%s9 + $0x8] sm:$0xf]
    %v516 = vld [vmem:[%s9 + $0xc] sm:$0xf]
    %v517 = vld [vmem:[%s9 + $0x10] sm:$0xf]
    %v518 = vld [vmem:[%s9 + $0x14] sm:$0xf]
    %v519 = vld [vmem:[%s9 + $0x18] sm:$0xf]
    %v520 = vld [vmem:[%s9 + $0x1c] sm:$0xf]
    %v521 = vld [vmem:[%s9 + $0x20] sm:$0xf]
    %v522 = vld [vmem:[%s9 + $0x24] sm:$0xf]
    %v523 = vld [vmem:[%s9 + $0x28] sm:$0xf]
    %v524 = vld [vmem:[%s9 + $0x2c] sm:$0xf]
    %v525 = vld [vmem:[%s9 + $0x30] sm:$0xf]
    %v526 = vld [vmem:[%s9 + $0x34] sm:$0xf]
    %v527 = vld [vmem:[%s9 + $0x38] sm:$0xf]
    %v528 = vld [vmem:[%s9 + $0x3c] sm:$0xf]
    %v529 = vld [vmem:[%s9 + $0x40] sm:$0xf]
    %v530 = vld [vmem:[%s9 + $0x44] sm:$0xf]
    %v531 = vld [vmem:[%s9 + $0x48] sm:$0xf]
    %v532 = vld [vmem:[%s9 + $0x4c] sm:$0xf]
    %v533 = vld [vmem:[%s9 + $0x50] sm:$0xf]
    %v534 = vld [vmem:[%s9 + $0x54] sm:$0xf]
    %v535 = vld [vmem:[%s9 + $0x58] sm:$0xf]
    %v536 = vld [vmem:[%s9 + $0x5c] sm:$0xf]
    %v537 = vld [vmem:[%s9 + $0x60] sm:$0xf]
    %v538 = vld [vmem:[%s9 + $0x64] sm:$0xf]
    %v539 = vld [vmem:[%s9 + $0x68] sm:$0xf]
    %v540 = vld [vmem:[%s9 + $0x6c] sm:$0xf]
    %v541 = vld [vmem:[%s9 + $0x70] sm:$0xf]
    %v542 = vld [vmem:[%s9 + $0x74] sm:$0xf]
    %v543 = vld [vmem:[%s9 + $0x78] sm:$0xf]
    %v544 = vld [vmem:[%s9 + $0x7c] sm:$0xf]
    %v545 = vld [vmem:[%s10] sm:$0x1]
    %v547 = vlaneseq
    %v548 = vshrl.u32 %v547, 7
    %v549 = vsub.s32 0, %v548
    %v550 = vrot.slane %v545, %v549
    %v584 = vunpack.c.l.b16 %v513
    %v585 = vunpack.c.l.b16 %v514
    %v586 = vunpack.c.l.b16 %v515
    %v587 = vunpack.c.l.b16 %v516
    %v588 = vunpack.c.l.b16 %v517
    %v589 = vunpack.c.l.b16 %v518
    %v590 = vunpack.c.l.b16 %v519
    %v591 = vunpack.c.l.b16 %v520
    %v592 = vunpack.c.l.b16 %v521
    %v593 = vunpack.c.l.b16 %v522
    %v594 = vunpack.c.l.b16 %v523
    %v595 = vunpack.c.l.b16 %v524
    %v596 = vunpack.c.l.b16 %v525
    %v597 = vunpack.c.l.b16 %v526
    %v598 = vunpack.c.l.b16 %v527
    %v599 = vunpack.c.l.b16 %v528
    %v600 = vunpack.c.l.b16 %v529
    %v601 = vunpack.c.l.b16 %v530
    %v602 = vunpack.c.l.b16 %v531
    %v603 = vunpack.c.l.b16 %v532
    %v604 = vunpack.c.l.b16 %v533
    %v605 = vunpack.c.l.b16 %v534
    %v606 = vunpack.c.l.b16 %v535
    %v607 = vunpack.c.l.b16 %v536
    %v608 = vunpack.c.l.b16 %v537
    %v609 = vunpack.c.l.b16 %v538
    %v610 = vunpack.c.l.b16 %v539
    %v611 = vunpack.c.l.b16 %v540
    %v612 = vunpack.c.l.b16 %v541
    %v613 = vunpack.c.l.b16 %v542
    %v614 = vunpack.c.l.b16 %v543
    %v615 = vunpack.c.l.b16 %v544
    %v616 = vpack.c.b16 %v585, %v584
    %v617 = vpack.c.b16 %v587, %v586
    %v618 = vpack.c.b16 %v589, %v588
    %v619 = vpack.c.b16 %v591, %v590
    %v620 = vpack.c.b16 %v593, %v592
    %v621 = vpack.c.b16 %v595, %v594
    %v622 = vpack.c.b16 %v597, %v596
    %v623 = vpack.c.b16 %v599, %v598
    %v624 = vpack.c.b16 %v601, %v600
    %v625 = vpack.c.b16 %v603, %v602
    %v626 = vpack.c.b16 %v605, %v604
    %v627 = vpack.c.b16 %v607, %v606
    %v628 = vpack.c.b16 %v609, %v608
    %v629 = vpack.c.b16 %v611, %v610
    %v630 = vpack.c.b16 %v613, %v612
    %v631 = vpack.c.b16 %v615, %v614
    %648 = vmatprep.subr.bf16.mxu0 0
    %649 = vmatpush1.bf16.msra.mxu0 %v616
    %650 = vmatprep.subr.bf16.mxu0 0
    %651 = vmatpush1.bf16.msra.mxu0 %v617
    %652 = vmatprep.subr.bf16.mxu0 0
    %653 = vmatpush1.bf16.msra.mxu0 %v618
    %654 = vmatprep.subr.bf16.mxu0 0
    %655 = vmatpush1.bf16.msra.mxu0 %v619
    %656 = vmatprep.subr.bf16.mxu0 0
    %657 = vmatpush1.bf16.msra.mxu0 %v620
    %658 = vmatprep.subr.bf16.mxu0 0
    %659 = vmatpush1.bf16.msra.mxu0 %v621
    %660 = vmatprep.subr.bf16.mxu0 0
    %661 = vmatpush1.bf16.msra.mxu0 %v622
    %662 = vmatprep.subr.bf16.mxu0 0
    %663 = vmatpush1.bf16.msra.mxu0 %v623
    %664 = vmatprep.subr.bf16.mxu0 0
    %665 = vmatpush1.bf16.msra.mxu0 %v624
    %666 = vmatprep.subr.bf16.mxu0 0
    %667 = vmatpush1.bf16.msra.mxu0 %v625
    %668 = vmatprep.subr.bf16.mxu0 0
    %669 = vmatpush1.bf16.msra.mxu0 %v626
    %670 = vmatprep.subr.bf16.mxu0 0
    %671 = vmatpush1.bf16.msra.mxu0 %v627
    %672 = vmatprep.subr.bf16.mxu0 0
    %673 = vmatpush1.bf16.msra.mxu0 %v628
    %674 = vmatprep.subr.bf16.mxu0 0
    %675 = vmatpush1.bf16.msra.mxu0 %v629
    %676 = vmatprep.subr.bf16.mxu0 0
    %677 = vmatpush1.bf16.msra.mxu0 %v630
    %678 = vmatprep.subr.bf16.mxu0 0
    %679 = vmatpush1.bf16.msra.mxu0 %v631
    %680 = vmatprep.mubr.bf16.mxu0 %v512
    %681 = vmatmul.mubr.bf16.gmra.mrb[0].mxu0 %v511
    %v682 = vpop.f32.mrb[0].mxu0
    %v683 = vadd.f32 %v550, %v682
    %v684 = vpop.f32.mrb[0].mxu0
    %v685 = vpop.f32.mrb[0].mxu0
    %v686 = vpop.f32.mrb[0].mxu0
    %687 = vdwg.mxu0
    %v688 = vld [vmem:[%s11] sm:$0x1]
    %v689 = vld [vmem:[%s12] sm:$0x1]
    %v690 = vxor.u32 %v683, 2147483648
    %v691 = vmul.f32 %v690, 1.442695
    %v692 = vpow.pop %v691
    %v693 = vadd.f32 %v692, 1.0
    %v694 = vrcp.pop %v693
    %v695 = vmul.f32 1.0, %v694
    %v697 = vlaneseq
    %v698 = vshrl.u32 %v697, 7
    %v699 = vsub.s32 0, %v698
    %v700 = vrot.slane %v689, %v699
    %v702 = vmul.f32 %v700, %v695
    %v704 = vlaneseq
    %v705 = vshrl.u32 %v704, 7
    %v706 = vsub.s32 0, %v705
    %v707 = vrot.slane %v688, %v706
    %v709 = vadd.f32 %v707, %v702
    %vm710 = vcmask 80896
    %711 = vst.msk [vmem:[#allocation7] sm:$0xff] %vm710, %v709
    // Predicated region
    $region62: #{decoder_forward.1} parent=1 // pred_check
      _
    $region63: #{decoder_forward.1} parent=1 // pred_check_branch
      %713 = sbr.rel (0) target = $region65
    $region64: #{decoder_forward.1} parent=1 // pred_region
      %s715 = ssub.s32 128, 128
      %716 = vsyncadd [#allocation4], %s715
      %s718 = sshll.u32 [#allocation7], 4
      %s719 = int_to_ptr.vmem [resolvable:$true] %s718
      %721 = dma.vmem_to_hbm [thread:$0]  %s719, 128, %s13, [#allocation4]
    $region65: #{decoder_forward.1} parent=1 // pred_fallthru
      _
    // Predicated region
    $region66: #{decoder_forward.1} parent=1 // pred_check
      _
    $region67: #{decoder_forward.1} parent=1 // pred_check_branch
      %723 = sbr.rel (0) target = $region69
    $region68: #{decoder_forward.1} parent=1 // pred_region
      %724 = dma.done [#allocation4], 128
    $region69: #{decoder_forward.1} parent=1 // pred_fallthru
      _
    %725 = vsyncpa [#allocation3], 1
    %726 = vsyncpa [#allocation6], 1
    %727 = vsyncpa [#allocation4], 1

</llo_original>
